<compile_context>
chip_gen: v7x
topology: tpu7x:2x2x1
jax: 0.10.0
libtpu: 0.0.40
codegen_flags: <defaults>
</compile_context>

<pallas_src>
import functools
import math

import jax
import jax.numpy as jnp
from jax import lax
from jax.experimental import pallas as pl
from jax.experimental.pallas import tpu as pltpu


# ---------------------------------------------------------------------------
# Helpers
# ---------------------------------------------------------------------------

def _cdiv(a, b):
    return -(-a // b)


def _round_up(x, m):
    return _cdiv(x, m) * m


def _tile(dim, target, align):
    """Largest `align`-multiple tile <= target that divides `dim`, else full dim."""
    if dim <= target:
        return dim
    t = (target // align) * align
    while t >= align:
        if dim % t == 0:
            return t
        t -= align
    return dim


def _vmem_limit_bytes():
    """Generation-aware scoped-VMEM budget: ~96 MiB on 128-MiB parts, ~48 MiB on v7x."""
    cap = 128 * 1024 * 1024
    try:
        cap = int(getattr(pltpu.get_tpu_info(), "vmem_capacity_bytes", cap))
    except Exception:
        pass
    return int(min(cap * 3 // 4, 96 * 1024 * 1024))


# ---------------------------------------------------------------------------
# Tiled linear:  y = x @ W + b
# ---------------------------------------------------------------------------

def _linear_kernel(x_ref, w_ref, b_ref, o_ref, acc_ref):
    k = pl.program_id(2)

    @pl.when(k == 0)
    def _init():
        acc_ref[...] = jnp.zeros_like(acc_ref)

    acc_ref[...] += jnp.dot(x_ref[...], w_ref[...],
                            preferred_element_type=jnp.float32)

    @pl.when(k == pl.num_programs(2) - 1)
    def _finalize():
        o_ref[...] = (acc_ref[...] + b_ref[...].astype(jnp.float32)).astype(o_ref.dtype)


def pallas_linear(x2d, w, b, *, tm=512, tn=512, tk=1024):
    """x2d: (M, K), w: (K, N) (pre-transposed vs nn.Linear), b: (N,) -> (M, N).

    Matmuls run in the input dtype (bf16 inputs -> bf16 MXU rate) with an f32
    VMEM accumulator."""
    M, K = x2d.shape
    N = w.shape[1]
    itemsize = x2d.dtype.itemsize
    vmem_limit = _vmem_limit_bytes()
    budget = vmem_limit * 6 // 10

    # Pad rows so tm never silently falls back to a huge full-M block.
    Mp = _round_up(M, 8)
    if Mp != M:
        x2d = jnp.pad(x2d, ((0, Mp - M), (0, 0)))

    tm = _tile(Mp, tm, 8)
    tn = _tile(N, tn, 128)
    tk = _tile(K, tk, 128)

    def usage(tm_, tn_, tk_):
        return (2 * (tm_ * tk_ + tk_ * tn_ + tm_ * tn_) * itemsize   # double-buffered x, w, out
                + tm_ * tn_ * 4 + 2 * tn_ * itemsize)                # f32 acc + bias

    while usage(tm, tn, tk) > budget:
        if tk > 128 and tk % 2 == 0 and K % (tk // 2) == 0 and (tk // 2) % 128 == 0:
            tk //= 2
        elif tn > 128 and tn % 2 == 0 and N % (tn // 2) == 0 and (tn // 2) % 128 == 0:
            tn //= 2
        elif tm > 8 and tm % 2 == 0 and Mp % (tm // 2) == 0 and (tm // 2) % 8 == 0:
            tm //= 2
        else:
            break

    grid = (Mp // tm, N // tn, K // tk)
    out = pl.pallas_call(
        _linear_kernel,
        out_shape=jax.ShapeDtypeStruct((Mp, N), x2d.dtype),
        grid=grid,
        in_specs=[
            pl.BlockSpec((tm, tk), lambda i, j, k: (i, k)),
            pl.BlockSpec((tk, tn), lambda i, j, k: (k, j)),
            pl.BlockSpec((1, tn), lambda i, j, k: (0, j)),
        ],
        out_specs=pl.BlockSpec((tm, tn), lambda i, j, k: (i, j)),
        scratch_shapes=[pltpu.VMEM((tm, tn), jnp.float32)],
        compiler_params=pltpu.CompilerParams(
            dimension_semantics=("parallel", "parallel", "arbitrary"),
            vmem_limit_bytes=vmem_limit,
        ),
    )(x2d, w, b.reshape(1, N))
    return out[:M] if Mp != M else out


# ---------------------------------------------------------------------------
# Flash attention over the heads-folded (B, S, D) layout
# ---------------------------------------------------------------------------

def _flash_mha_kernel(*refs, H, dk, kv_len, has_mask, needs_kv_bound):
    if has_mask:
        flags_ref, mask_ref, q_ref, k_ref, v_ref, o_ref, m_ref, l_ref, acc_ref = refs
    else:
        q_ref, k_ref, v_ref, o_ref, m_ref, l_ref, acc_ref = refs

    ki = pl.program_id(2)
    tq = q_ref.shape[0]
    tkv = k_ref.shape[0]
    bf16_softmax = v_ref.dtype == jnp.bfloat16   # bf16 EUP exp / bf16 PV feed on bf16 models

    @pl.when(ki == 0)
    def _init():
        m_ref[...] = jnp.full_like(m_ref, -jnp.inf)
        l_ref[...] = jnp.zeros_like(l_ref)
        acc_ref[...] = jnp.zeros_like(acc_ref)

    # dot_general contracting the last axes: no explicit k.T (keeps the XLU slot free).
    dn_qk = (((1,), (1,)), ((), ()))   # (tq,dk) x (tkv,dk) -> (tq,tkv)
    dn_pv = (((1,), (0,)), ((), ()))   # (tq,tkv) x (tkv,dk) -> (tq,dk)

    def _process():
        if has_mask:
            masked_out = mask_ref[...].astype(jnp.int32) == 0        # (tq, tkv) bool
        if needs_kv_bound:
            col = ki * tkv + lax.broadcasted_iota(jnp.int32, (tq, tkv), 1)
            col_ok = col < kv_len

        for h in range(H):                                           # static unroll over heads
            lo = h * dk
            # Per-head operands: ref-side static lane slices (scale already folded
            # into the projection weights, so q needs no rescale).
            s = lax.dot_general(q_ref[:, lo:lo + dk], k_ref[:, lo:lo + dk], dn_qk,
                                preferred_element_type=jnp.float32)  # (tq, tkv) f32
            if has_mask:
                s = jnp.where(masked_out, jnp.float32(-1000000000.0), s)
            if needs_kv_bound:
                s = jnp.where(col_ok, s, -jnp.inf)   # padded kv columns -> exactly 0 weight

            m_prev = m_ref[h]                                        # (tq, 1)
            m_new = jnp.maximum(m_prev, jnp.max(s, axis=-1, keepdims=True))
            alpha = jnp.exp(m_prev - m_new)
            s = s - m_new
            p = jnp.exp(s.astype(jnp.bfloat16)) if bf16_softmax else jnp.exp(s)
            l_ref[h] = alpha * l_ref[h] + jnp.sum(p.astype(jnp.float32),
                                                  axis=-1, keepdims=True)
            pv = lax.dot_general(p.astype(v_ref.dtype), v_ref[:, lo:lo + dk], dn_pv,
                                 preferred_element_type=jnp.float32)  # (tq, dk)
            acc_ref[h] = alpha * acc_ref[h] + pv
            m_ref[h] = m_new

    if has_mask:
        # Scalar-prefetched per-tile flag: 0 => tile is fully masked and safe to skip.
        idx = ((pl.program_id(0) * pl.num_programs(1) + pl.program_id(1))
               * pl.num_programs(2) + ki)
        pl.when(flags_ref[idx] != 0)(_process)
    else:
        _process()

    @pl.when(ki == pl.num_programs(2) - 1)
    def _finalize():
        # Assemble the full (tq, D) row and issue ONE lane-dense store
        # (no per-head sub-128-lane masked stores).
        cols = []
        for h in range(H):
            l = l_ref[h]
            inv = pl.reciprocal(l, approx=True)
            inv = inv * (2.0 - l * inv)          # one Newton step -> ~f32-exact
            cols.append(acc_ref[h] * inv)
        o_ref[...] = jnp.concatenate(cols, axis=-1).astype(o_ref.dtype)


def pallas_flash_mha(q, k, v, mask, h, *, d_model, q_blk=0, k_blk=0, v_blk=0,
                     tq_target=256, tkv_target=1024):
    """Flash attention over the heads-folded layout.

    q/k/v: (B, S, n*d_model) -- possibly the SAME fused projection output; the
    `*_blk` lane-block indices select which d_model-wide column block each operand
    reads (no qkv column-slice copies in HBM).  mask: (B, Sq, Sk) or None."""
    B, Sq = q.shape[0], q.shape[1]
    Sk = k.shape[1]
    D = d_model
    dk = D // h
    itemsize = q.dtype.itemsize
    has_mask = mask is not None

    vmem_limit = _vmem_limit_bytes()
    budget = vmem_limit * 6 // 10

    # ---- tile selection against a generation-aware VMEM budget -------------------
    tq = Sq if Sq <= tq_target else max(32, (tq_target // 32) * 32)
    tkv = Sk if Sk <= tkv_target else max(128, (tkv_target // 128) * 128)

    def usage(tq_, tkv_):
        io = 2 * (2 * tq_ * D + 2 * tkv_ * D) * itemsize        # q/out + k/v, double-buffered
        msk = 2 * tq_ * tkv_ if has_mask else 0                 # int8 mask block
        scr = tq_ * (8 * h + 4 * D)                             # m, l, acc scratch (f32)
        tmp = 3 * tq_ * tkv_ * 4                                # live s/p temporaries headroom
        return io + msk + scr + tmp

    while usage(tq, tkv) > budget:
        if tkv > 128:
            tkv = max(128, ((tkv // 2) + 127) // 128 * 128)
        elif tq > 32:
            tq = max(32, ((tq // 2) + 31) // 32 * 32)
        else:
            break

    # v7x has two TensorCores: keep the parallel grid extent >= 2 when possible.
    while B * _cdiv(Sq, tq) < 2 and tq > 32:
        tq = max(32, ((tq // 2) + 31) // 32 * 32)

    # ---- pad ragged sequence lengths to the chosen tiles (no full-array fallback) -
    Sq_p = _round_up(Sq, tq)
    Sk_p = _round_up(Sk, tkv)
    pad_q, pad_k = Sq_p - Sq, Sk_p - Sk
    needs_kv_bound = pad_k > 0
    if pad_q:
        q = jnp.pad(q, ((0, 0), (0, pad_q), (0, 0)))
    if pad_k:
        k = jnp.pad(k, ((0, 0), (0, pad_k), (0, 0)))
        v = jnp.pad(v, ((0, 0), (0, pad_k), (0, 0)))
    nq, nk = Sq_p // tq, Sk_p // tkv
    grid = (B, nq, nk)

    kernel = functools.partial(_flash_mha_kernel, H=h, dk=dk, kv_len=Sk,
                               has_mask=has_mask, needs_kv_bound=needs_kv_bound)

    if has_mask:
        def imap(fn):
            return lambda b, qi, ki, flags: fn(b, qi, ki)
    else:
        def imap(fn):
            return lambda b, qi, ki: fn(b, qi, ki)

    q_spec = pl.BlockSpec((None, tq, D), imap(lambda b, qi, ki: (b, qi, q_blk)))
    k_spec = pl.BlockSpec((None, tkv, D), imap(lambda b, qi, ki: (b, ki, k_blk)))
    v_spec = pl.BlockSpec((None, tkv, D), imap(lambda b, qi, ki: (b, ki, v_blk)))
    o_spec = pl.BlockSpec((None, tq, D), imap(lambda b, qi, ki: (b, qi, 0)))
    in_specs = [q_spec, k_spec, v_spec]
    args = [q, k, v]
    num_prefetch = 0
    prefetch_args = ()

    if has_mask:
        mb = mask != 0
        mask_i8 = mb.astype(jnp.int8)                 # 4x less mask HBM traffic
        if pad_q or pad_k:
            mask_i8 = jnp.pad(mask_i8, ((0, 0), (0, pad_q), (0, pad_k)))
            mb = mask_i8 != 0
        # Per-tile "must compute" flags.  A tile is skipped only if it is fully
        # masked AND every real query row of its q-tile attends to something
        # somewhere, so fully-masked rows keep the reference's uniform-softmax
        # (mean-of-V) behaviour.
        tile_any = mb.reshape(B, nq, tq, nk, tkv).any(axis=(2, 4))        # (B, nq, nk)
        row_any = mb.any(axis=-1)                                          # (B, Sq_p)
        if pad_q:
            row_any = row_any.at[:, Sq:].set(True)
        qtile_ok = row_any.reshape(B, nq, tq).all(axis=-1)                 # (B, nq)
        flags = (tile_any | (~qtile_ok)[:, :, None]).astype(jnp.int32).reshape(-1)
        in_specs = [pl.BlockSpec((None, tq, tkv),
                                 imap(lambda b, qi, ki: (b, qi, ki)))] + in_specs
        args = [mask_i8] + args
        num_prefetch = 1
        prefetch_args = (flags,)

    out = pl.pallas_call(
        kernel,
        out_shape=jax.ShapeDtypeStruct((B, Sq_p, D), q.dtype),
        grid_spec=pltpu.PrefetchScalarGridSpec(
            num_scalar_prefetch=num_prefetch,
            grid=grid,
            in_specs=in_specs,
            out_specs=o_spec,
            scratch_shapes=[
                pltpu.VMEM((h, tq, 1), jnp.float32),    # running max  m
                pltpu.VMEM((h, tq, 1), jnp.float32),    # running sum  l
                pltpu.VMEM((h, tq, dk), jnp.float32),   # running acc
            ]),
        compiler_params=pltpu.CompilerParams(
            dimension_semantics=("parallel", "parallel", "arbitrary"),
            vmem_limit_bytes=vmem_limit,
        ),
    )(*prefetch_args, *args)
    return out[:, :Sq, :] if pad_q else out


# ---------------------------------------------------------------------------
# MultiHeadedAttention forward
# ---------------------------------------------------------------------------

def init_mha_params(key, h, d_model, dtype=jnp.float32):
    assert d_model % h == 0
    ks = jax.random.split(key, 4)
    bound = 1.0 / math.sqrt(d_model)
    # Weights stored pre-transposed: (d_in, d_out).  Q/K/V concatenated along the
    # output dim so the self-attention projection is a single fused matmul.
    w_qkv = jax.random.uniform(ks[0], (d_model, 3 * d_model), dtype, -bound, bound)
    b_qkv = jax.random.uniform(ks[1], (3 * d_model,), dtype, -bound, bound)
    w_o = jax.random.uniform(ks[2], (d_model, d_model), dtype, -bound, bound)
    b_o = jax.random.uniform(ks[3], (d_model,), dtype, -bound, bound)

    # Fold 1/sqrt(d_k) into the Q columns once, at init (free at run time).
    scale = 1.0 / math.sqrt(d_model // h)
    col_scale = jnp.concatenate([jnp.full((d_model,), scale, dtype),
                                 jnp.ones((2 * d_model,), dtype)])
    w_qkv_s = (w_qkv * col_scale[None, :]).astype(dtype)
    b_qkv_s = (b_qkv * col_scale).astype(dtype)

    return dict(
        h=h, d_model=d_model,
        w_qkv=w_qkv, b_qkv=b_qkv,                       # unscaled (reference math)
        w_qkv_s=w_qkv_s, b_qkv_s=b_qkv_s,               # fused, Q-scaled (self-attn)
        # Pre-split projections for the cross-attention paths (no per-call slicing):
        w_q_s=w_qkv_s[:, :d_model], b_q_s=b_qkv_s[:d_model],
        w_kv=w_qkv[:, d_model:], b_kv=b_qkv[d_model:],
        w_k=w_qkv[:, d_model:2 * d_model], b_k=b_qkv[d_model:2 * d_model],
        w_v=w_qkv[:, 2 * d_model:], b_v=b_qkv[2 * d_model:],
        w_o=w_o, b_o=b_o)


def _cast_params(params, dtype):
    return {k: (v.astype(dtype)
                if hasattr(v, "dtype") and jnp.issubdtype(v.dtype, jnp.floating) else v)
            for k, v in params.items()}


def multi_headed_attention(params, query, key, value, mask=None, attn_tiles=None):
    """query/key/value: (B, S, d_model); mask: (B, Sq, Sk) or None (nonzero = attend)."""
    h = params["h"]
    D = params["d_model"]
    B, Sq, _ = query.shape
    Sk = key.shape[1]
    tq_t, tkv_t = attn_tiles if attn_tiles is not None else (256, 1024)

    # With a lane-aligned d_model the fused projection output is handed to the
    # attention kernel as-is: the BlockSpec lane-block index (0/1/2) selects Q/K/V,
    # so no qkv column-slice copies hit HBM.
    lane_fused = (D % 128 == 0)

    if (query is key) and (key is value):
        # Self-attention: one fused QKV matmul (x read from HBM once).
        qkv = pallas_linear(query.reshape(B * Sq, D), params["w_qkv_s"],
                            params["b_qkv_s"]).reshape(B, Sq, 3 * D)
        if lane_fused:
            qa, ka, va = qkv, qkv, qkv
            qb, kb, vb = 0, 1, 2
        else:
            qa, ka, va = qkv[..., :D], qkv[..., D:2 * D], qkv[..., 2 * D:]
            qb, kb, vb = 0, 0, 0
    else:
        qa = pallas_linear(query.reshape(B * Sq, D), params["w_q_s"],
                           params["b_q_s"]).reshape(B, Sq, D)
        qb = 0
        if key is value:
            # Cross-attention with a shared K/V source: one fused KV matmul.
            kv = pallas_linear(key.reshape(B * Sk, D), params["w_kv"],
                               params["b_kv"]).reshape(B, Sk, 2 * D)
            if lane_fused:
                ka, va, kb, vb = kv, kv, 0, 1
            else:
                ka, va, kb, vb = kv[..., :D], kv[..., D:], 0, 0
        else:
            ka = pallas_linear(key.reshape(B * Sk, D), params["w_k"],
                               params["b_k"]).reshape(B, Sk, D)
            va = pallas_linear(value.reshape(B * Sk, D), params["w_v"],
                               params["b_v"]).reshape(B, Sk, D)
            kb, vb = 0, 0

    # Heads stay folded in the lane dim end-to-end (no head split/merge transposes).
    x = pallas_flash_mha(qa, ka, va, mask, h, d_model=D,
                         q_blk=qb, k_blk=kb, v_blk=vb,
                         tq_target=tq_t, tkv_target=tkv_t)            # (B, Sq, D)
    out = pallas_linear(x.reshape(B * Sq, D), params["w_o"], params["b_o"])
    return out.reshape(B, Sq, D)


# ---------------------------------------------------------------------------
# Pure-JAX reference (mirrors the PyTorch module's math)
# ---------------------------------------------------------------------------

def ref_mha(params, query, key, value, mask=None):
    h = params["h"]
    D = params["d_model"]
    dk = D // h
    B, Sq, _ = query.shape
    wq, wk, wv = (params["w_qkv"][:, i * D:(i + 1) * D] for i in range(3))
    bq, bk, bv = (params["b_qkv"][i * D:(i + 1) * D] for i in range(3))

    def proj(x, w, b):
        S = x.shape[1]
        y = x.reshape(-1, D) @ w + b
        return y.reshape(B, S, h, dk).transpose(0, 2, 1, 3)

    q = proj(query, wq, bq)
    k = proj(key, wk, bk)
    v = proj(value, wv, bv)
    scores = jnp.einsum("bhqd,bhkd->bhqk", q, k) / math.sqrt(dk)
    if mask is not None:
        scores = jnp.where(mask[:, None, :, :] == 0, -1000000000.0, scores)
    p = jax.nn.softmax(scores, axis=-1)
    x = jnp.einsum("bhqk,bhkd->bhqd", p, v)
    x = x.transpose(0, 2, 1, 3).reshape(B, Sq, D)
    return (x.reshape(-1, D) @ params["w_o"] + params["b_o"]).reshape(B, Sq, D)


if __name__ == "__main__":
    B, S, D, H = 2, 8, 32, 4
    key0 = jax.random.PRNGKey(0)
    kp, kx, ky, k5 = jax.random.split(key0, 4)

    params = init_mha_params(kp, H, D)
    x = jax.random.normal(kx, (B, S, D), jnp.float32)
    y = jax.random.normal(ky, (B, S, D), jnp.float32)
    causal = jnp.broadcast_to(jnp.tril(jnp.ones((S, S), jnp.int32)), (B, S, S))

    # 1) self-attention, causal mask (fused QKV + scalar-prefetched tile-skip flags)
    out1 = jax.block_until_ready(multi_headed_attention(params, x, x, x, causal))
    ref1 = ref_mha(params, x, x, x, causal)
    assert out1.shape == (B, S, D)
    assert jnp.allclose(out1, ref1, atol=2e-4, rtol=2e-4), "masked self-attn mismatch"

    # 2) self-attention, no mask (mask select / flags skipped entirely)
    out2 = jax.block_until_ready(multi_headed_attention(params, x, x, x, None))
    ref2 = ref_mha(params, x, x, x, None)
    assert jnp.allclose(out2, ref2, atol=2e-4, rtol=2e-4), "unmasked self-attn mismatch"

    # 3) cross-attention (separate Q projection + fused KV projection)
    out3 = jax.block_until_ready(multi_headed_attention(params, x, y, y, None))
    ref3 = ref_mha(params, x, y, y, None)
    assert jnp.allclose(out3, ref3, atol=2e-4, rtol=2e-4), "cross-attn mismatch"

    # 4) bf16 end-to-end (bf16 MXU matmuls + bf16 softmax exp), loose tolerance
    params_bf = _cast_params(params, jnp.bfloat16)
    xb = x.astype(jnp.bfloat16)
    out4 = jax.block_until_ready(multi_headed_attention(params_bf, xb, xb, xb, causal))
    ref4 = ref_mha(_cast_params(params_bf, jnp.float32),
                   xb.astype(jnp.float32), xb.astype(jnp.float32),
                   xb.astype(jnp.float32), causal)
    assert jnp.allclose(out4.astype(jnp.float32), ref4, atol=1e-1, rtol=1e-1), \
        "bf16 self-attn mismatch"

    # 5) padded + tile-skipping path: longer causal sequence with small forced tiles
    S5 = 200
    x5 = jax.random.normal(k5, (1, S5, D), jnp.float32)
    causal5 = jnp.tril(jnp.ones((1, S5, S5), jnp.int32))
    out5 = jax.block_until_ready(
        multi_headed_attention(params, x5, x5, x5, causal5, attn_tiles=(64, 128)))
    ref5 = ref_mha(params, x5, x5, x5, causal5)
    assert jnp.allclose(out5, ref5, atol=2e-4, rtol=2e-4), "padded masked mismatch"

    # 6) padded, unmasked (in-kernel kv-length bound on the padded columns)
    out6 = jax.block_until_ready(
        multi_headed_attention(params, x5, x5, x5, None, attn_tiles=(64, 128)))
    ref6 = ref_mha(params, x5, x5, x5, None)
    assert jnp.allclose(out6, ref6, atol=2e-4, rtol=2e-4), "padded unmasked mismatch"

    # 7) lane-aligned d_model: fused (B,S,3D) qkv passed straight to the attention
    #    kernel with lane-block indices (no qkv column-slice copies)
    params7 = init_mha_params(kp, 2, 128)
    x7 = jax.random.normal(ky, (1, 16, 128), jnp.float32)
    causal7 = jnp.tril(jnp.ones((1, 16, 16), jnp.int32))
    out7 = jax.block_until_ready(multi_headed_attention(params7, x7, x7, x7, causal7))
    ref7 = ref_mha(params7, x7, x7, x7, causal7)
    assert jnp.allclose(out7, ref7, atol=2e-4, rtol=2e-4), "lane-fused self-attn mismatch"

    print("KERNEL_OK")
</pallas_src>

<mosaic_0001>
module attributes {stable_mosaic.version = 11 : i64} {
  func.func @_linear_kernel(%arg0: i32, %arg1: i32, %arg2: i32, %arg3: memref<16x32xf32, #tpu.memory_space<vmem>>, %arg4: memref<32x96xf32, #tpu.memory_space<vmem>>, %arg5: memref<1x96xf32, #tpu.memory_space<vmem>>, %arg6: memref<16x96xf32, #tpu.memory_space<vmem>>, %arg7: memref<16x96xf32, #tpu.memory_space<vmem>>) attributes {dimension_semantics = [#tpu.dimension_semantics<parallel>, #tpu.dimension_semantics<parallel>, #tpu.dimension_semantics<arbitrary>], iteration_bounds = array<i64: 1, 1, 1>, scalar_prefetch = 0 : i64, scratch_operands = 1 : i64, tpu.core_type = #tpu.core_type<tc>, window_params = [{transform_indices = @transform_0, window_bounds = array<i64: 16, 32>}, {transform_indices = @transform_1, window_bounds = array<i64: 32, 96>}, {transform_indices = @transform_2, window_bounds = array<i64: 1, 96>}, {transform_indices = @transform_3, window_bounds = array<i64: 16, 96>}]} {
    %c0_i32 = arith.constant 0 : i32
    %0 = arith.cmpi eq, %arg2, %c0_i32 : i32
    %1 = arith.extui %0 : i1 to i32
    %c0_i32_0 = arith.constant 0 : i32
    %2 = arith.cmpi ne, %1, %c0_i32_0 : i32
    scf.if %2 {
      %cst_10 = arith.constant 0.000000e+00 : f32
      %12 = vector.broadcast %cst_10 : f32 to vector<16x96xf32>
      %c0_11 = arith.constant 0 : index
      %c0_12 = arith.constant 0 : index
      %13 = vector.load %arg7[%c0_11, %c0_12] : memref<16x96xf32, #tpu.memory_space<vmem>>, vector<16x96xf32>
      tpu.vector_store %arg7[%c0_11, %c0_12], %12 {strides = array<i32>} : memref<16x96xf32, #tpu.memory_space<vmem>>, vector<16x96xf32>,
    } else {
    }
    %c0 = arith.constant 0 : index
    %c0_1 = arith.constant 0 : index
    %3 = vector.load %arg7[%c0, %c0_1] : memref<16x96xf32, #tpu.memory_space<vmem>>, vector<16x96xf32>
    %c0_2 = arith.constant 0 : index
    %c0_3 = arith.constant 0 : index
    %4 = vector.load %arg3[%c0_2, %c0_3] : memref<16x32xf32, #tpu.memory_space<vmem>>, vector<16x32xf32>
    %c0_4 = arith.constant 0 : index
    %c0_5 = arith.constant 0 : index
    %5 = vector.load %arg4[%c0_4, %c0_5] : memref<32x96xf32, #tpu.memory_space<vmem>>, vector<32x96xf32>
    %cst = arith.constant dense<0.000000e+00> : vector<16x96xf32>
    %6 = tpu.matmul %4, %5, %cst {dimension_numbers = #tpu.dot_dimension_numbers<[1], [0], [0], [1], [0, 0, 1, 1], [], []>} : vector<16x32xf32>, vector<32x96xf32>, vector<16x96xf32> -> vector<16x96xf32>
    %7 = arith.addf %3, %6 : vector<16x96xf32>
    %c0_6 = arith.constant 0 : index
    %c0_7 = arith.constant 0 : index
    %8 = vector.load %arg7[%c0_6, %c0_7] : memref<16x96xf32, #tpu.memory_space<vmem>>, vector<16x96xf32>
    tpu.vector_store %arg7[%c0_6, %c0_7], %7 {strides = array<i32>} : memref<16x96xf32, #tpu.memory_space<vmem>>, vector<16x96xf32>,
    %c0_i32_8 = arith.constant 0 : i32
    %9 = arith.cmpi eq, %arg2, %c0_i32_8 : i32
    %10 = arith.extui %9 : i1 to i32
    %c0_i32_9 = arith.constant 0 : i32
    %11 = arith.cmpi ne, %10, %c0_i32_9 : i32
    scf.if %11 {
      %c0_10 = arith.constant 0 : index
      %c0_11 = arith.constant 0 : index
      %12 = vector.load %arg7[%c0_10, %c0_11] : memref<16x96xf32, #tpu.memory_space<vmem>>, vector<16x96xf32>
      %c0_12 = arith.constant 0 : index
      %c0_13 = arith.constant 0 : index
      %13 = vector.load %arg5[%c0_12, %c0_13] : memref<1x96xf32, #tpu.memory_space<vmem>>, vector<1x96xf32>
      %14 = vector.broadcast %13 : vector<1x96xf32> to vector<16x96xf32>
      %15 = arith.addf %12, %14 : vector<16x96xf32>
      %c0_14 = arith.constant 0 : index
      %c0_15 = arith.constant 0 : index
      %16 = vector.load %arg6[%c0_14, %c0_15] : memref<16x96xf32, #tpu.memory_space<vmem>>, vector<16x96xf32>
      tpu.vector_store %arg6[%c0_14, %c0_15], %15 {strides = array<i32>} : memref<16x96xf32, #tpu.memory_space<vmem>>, vector<16x96xf32>,
    } else {
    }
    return
  }
  func.func @transform_0(%arg0: i32, %arg1: i32, %arg2: i32) -> (i32, i32) {
    %c0_i32 = arith.constant 0 : i32
    return %arg0, %arg2 : i32, i32
  }
  func.func @transform_1(%arg0: i32, %arg1: i32, %arg2: i32) -> (i32, i32) {
    %c0_i32 = arith.constant 0 : i32
    return %arg2, %arg1 : i32, i32
  }
  func.func @transform_2(%arg0: i32, %arg1: i32, %arg2: i32) -> (i32, i32) {
    %c0_i32 = arith.constant 0 : i32
    %c0_i32_0 = arith.constant 0 : i32
    return %c0_i32, %arg1 : i32, i32
  }
  func.func @transform_3(%arg0: i32, %arg1: i32, %arg2: i32) -> (i32, i32) {
    %c0_i32 = arith.constant 0 : i32
    return %arg0, %arg1 : i32, i32
  }
}

</mosaic_0001>

<llo_original>
// kernel: tpu_custom_call.1
$region0: #{tpu_custom_call.1}
  #allocation0 [shape = 'u32[]', space=smem, size = 0x4, offset = 0x4, fixed_abs, tag = 'smem constant byte address 0x4 - core index']
  #allocation1 [shape = 'u32[144,128]{1,0:T(1,128)}', space=vmem, size = 0x12000, scoped, tag = 'internal scratch']
  #allocation2 [shape = 'f32[16,96]{1,0:T(8,128)}', space=vmem, size = 0x2000, scoped, tag = 'scratch operand']
  %s0 = inlined_call_operand.hbm [shape: f32[16,32], index: 0, kind: input, shape index: {}]
  %s1 = inlined_call_operand.hbm [shape: f32[32,96], index: 1, kind: input, shape index: {}]
  %s2 = inlined_call_operand.hbm [shape: f32[1,96], index: 2, kind: input, shape index: {}]
  %s3 = inlined_call_operand.hbm [shape: f32[16,96], index: 3, kind: output, shape index: {}]
  %s4 = sld [smem:[#allocation0]]
  $region42: #{tpu_custom_call.1} parent=0
    _
  %s6 = ssub.s32 1, %s4
  %s7 = scalar_select 0, %s6, %s4
  $region1: #{tpu_custom_call.1} parent=0
    #allocation3 [shape = 'u8[8192]{0}', space=vmem, size = 0x2000, scoped, tag = 'input window, operand 0, single buffered']
    #allocation4 [shape = 's32[1]{0}', space=sflag, size = 0x4, scoped, tag = 'scoped memory for tpu_custom_call.1']
    #allocation5 [shape = 's32[1]{0}', space=sflag, size = 0x4, scoped, tag = 'scoped memory for tpu_custom_call.1']
    #allocation6 [shape = 'u8[16384]{0}', space=vmem, size = 0x4000, scoped, tag = 'input window, operand 1, single buffered']
    #allocation7 [shape = 's32[1]{0}', space=sflag, size = 0x4, scoped, tag = 'scoped memory for tpu_custom_call.1']
    #allocation8 [shape = 'u8[512]{0}', space=vmem, size = 0x400, scoped, tag = 'input window, operand 2, single buffered']
    #allocation9 [shape = 'u8[8192]{0}', space=vmem, size = 0x2000, scoped, tag = 'output window, operand 0, single buffered']
    %8 = vsyncpa [#allocation4], 0
    %9 = vsyncpa [#allocation7], 0
    %10 = vsyncpa [#allocation5], 0
    // Predicated region
    $region2: #{tpu_custom_call.1} parent=1 // pred_check
      _
    $region3: #{tpu_custom_call.1} parent=1 // pred_check_branch
      %12 = sbr.rel (0) target = $region5
    $region4: #{tpu_custom_call.1} parent=1 // pred_region
      %s14 = ssub.s32 256, 256
      %15 = vsyncadd [#allocation4], %s14
      %s16 = sshll.u32 [#allocation3], 4
      %s17 = int_to_ptr.vmem [resolvable:$true] %s16
      %22 = dma.hbm_to_vmem [thread:$0]  %s0, 256, %s17, [#allocation4], 128, 128, 8
    $region5: #{tpu_custom_call.1} parent=1 // pred_fallthru
      _
    // Predicated region
    $region6: #{tpu_custom_call.1} parent=1 // pred_check
      _
    $region7: #{tpu_custom_call.1} parent=1 // pred_check_branch
      %24 = sbr.rel (0) target = $region9
    $region8: #{tpu_custom_call.1} parent=1 // pred_region
      %s26 = ssub.s32 512, 512
      %27 = vsyncadd [#allocation7], %s26
      %s28 = sshll.u32 [#allocation6], 4
      %s29 = int_to_ptr.vmem [resolvable:$true] %s28
      %34 = dma.hbm_to_vmem [thread:$0]  %s1, 512, %s29, [#allocation7], 128, 128, 8
    $region9: #{tpu_custom_call.1} parent=1 // pred_fallthru
      _
    // Predicated region
    $region10: #{tpu_custom_call.1} parent=1 // pred_check
      _
    $region11: #{tpu_custom_call.1} parent=1 // pred_check_branch
      %36 = sbr.rel (0) target = $region13
    $region12: #{tpu_custom_call.1} parent=1 // pred_region
      %s38 = ssub.s32 16, 16
      %39 = vsyncadd [#allocation7], %s38
      %s41 = sshll.u32 [#allocation8], 4
      %s42 = int_to_ptr.vmem [resolvable:$true] %s41
      %44 = dma.hbm_to_vmem [thread:$0]  %s2, 16, %s42, [#allocation7]
    $region13: #{tpu_custom_call.1} parent=1 // pred_fallthru
      _
    // Predicated region
    $region14: #{tpu_custom_call.1} parent=1 // pred_check
      _
    $region15: #{tpu_custom_call.1} parent=1 // pred_check_branch
      %46 = sbr.rel (0) target = $region17
    $region16: #{tpu_custom_call.1} parent=1 // pred_region
      %47 = dma.done [#allocation4], 256
    $region17: #{tpu_custom_call.1} parent=1 // pred_fallthru
      _
    // Predicated region
    $region18: #{tpu_custom_call.1} parent=1 // pred_check
      _
    $region19: #{tpu_custom_call.1} parent=1 // pred_check_branch
      %49 = sbr.rel (0) target = $region21
    $region20: #{tpu_custom_call.1} parent=1 // pred_region
      %50 = dma.done [#allocation7], 512
    $region21: #{tpu_custom_call.1} parent=1 // pred_fallthru
      _
    // Predicated region
    $region22: #{tpu_custom_call.1} parent=1 // pred_check
      _
    $region23: #{tpu_custom_call.1} parent=1 // pred_check_branch
      %52 = sbr.rel (0) target = $region25
    $region24: #{tpu_custom_call.1} parent=1 // pred_region
      %53 = dma.done [#allocation7], 16
    $region25: #{tpu_custom_call.1} parent=1 // pred_fallthru
      _
    %p54 = scmp.eq.s32.totalorder 0, 0
    // Predicated region
    $region26: #{tpu_custom_call.1} parent=1 // pred_check
      %p55 = pneg %p54
    $region27: #{tpu_custom_call.1} parent=1 // pred_check_branch
      %57 = sbr.rel (%p55) target = $region29
    $region28: #{tpu_custom_call.1} parent=1 // pred_region
      %vm58 = vcmask 785408
      %59 = vst.msk [vmem:[#allocation2] sm:$0xff] %vm58, 0.0
      %60 = vst.msk [vmem:[#allocation2 + $0x8] sm:$0xff] %vm58, 0.0
    $region29: #{tpu_custom_call.1} parent=1 // pred_fallthru
      _
    %v61 = vld [vmem:[#allocation2] sm:$0xff]
    %v62 = vld [vmem:[#allocation2 + $0x8] sm:$0xff]
    %v63 = vld [vmem:[#allocation3] sm:$0xff]
    %v64 = vld [vmem:[#allocation3 + $0x8] sm:$0xff]
    %v65 = vld [vmem:[#allocation6] sm:$0xff]
    %v66 = vld [vmem:[#allocation6 + $0x8] sm:$0xff]
    %v67 = vld [vmem:[#allocation6 + $0x10] sm:$0xff]
    %v68 = vld [vmem:[#allocation6 + $0x18] sm:$0xff]
    %vm69 = vcmask 261120
    %v71 = vsel %vm69, %v63, 0
    %v74 = vsel %vm69, %v64, 0
    %76 = vmatprep.subr.mxu0 0.0
    %77 = vmatpush1.msra.mxu0 %v65
    %78 = vmatprep.subr.mxu0 0.0
    %79 = vmatpush1.msra.mxu0 %v66
    %80 = vmatprep.subr.mxu0 0.0
    %81 = vmatpush1.msra.mxu0 %v67
    %82 = vmatprep.subr.mxu0 0.0
    %83 = vmatpush1.msra.mxu0 %v68
    %84 = vmatprep.subr.mxu0 0.0
    %85 = vmatpush1.msra.mxu0 0.0
    %86 = vmatprep.subr.mxu0 0.0
    %87 = vmatpush1.msra.mxu0 0.0
    %88 = vmatprep.subr.mxu0 0.0
    %89 = vmatpush1.msra.mxu0 0.0
    %90 = vmatprep.subr.mxu0 0.0
    %91 = vmatpush1.msra.mxu0 0.0
    %92 = vmatprep.subr.mxu0 0.0
    %93 = vmatpush1.msra.mxu0 0.0
    %94 = vmatprep.subr.mxu0 0.0
    %95 = vmatpush1.msra.mxu0 0.0
    %96 = vmatprep.subr.mxu0 0.0
    %97 = vmatpush1.msra.mxu0 0.0
    %98 = vmatprep.subr.mxu0 0.0
    %99 = vmatpush1.msra.mxu0 0.0
    %100 = vmatprep.subr.mxu0 0.0
    %101 = vmatpush1.msra.mxu0 0.0
    %102 = vmatprep.subr.mxu0 0.0
    %103 = vmatpush1.msra.mxu0 0.0
    %104 = vmatprep.subr.mxu0 0.0
    %105 = vmatpush1.msra.mxu0 0.0
    %106 = vmatprep.subr.mxu0 0.0
    %107 = vmatpush1.msra.mxu0 0.0
    %108 = vmatprep.subr.mxu0 0.0
    %109 = vmatpush1.msra.mxu0 0.0
    %110 = vmatprep.subr.mxu0 0.0
    %111 = vmatpush1.msra.mxu0 0.0
    %112 = vmatprep.subr.mxu0 0.0
    %113 = vmatpush1.msra.mxu0 0.0
    %114 = vmatprep.subr.mxu0 0.0
    %115 = vmatpush1.msra.mxu0 0.0
    %116 = vmatprep.subr.mxu0 0.0
    %117 = vmatpush1.msra.mxu0 0.0
    %118 = vmatprep.subr.mxu0 0.0
    %119 = vmatpush1.msra.mxu0 0.0
    %120 = vmatprep.subr.mxu0 0.0
    %121 = vmatpush1.msra.mxu0 0.0
    %122 = vmatprep.subr.mxu0 0.0
    %123 = vmatpush1.msra.mxu0 0.0
    %124 = vmatprep.subr.mxu0 0.0
    %125 = vmatpush1.msra.mxu0 0.0
    %126 = vmatprep.subr.mxu0 0.0
    %127 = vmatpush1.msra.mxu0 0.0
    %128 = vmatprep.subr.mxu0 0.0
    %129 = vmatpush1.msra.mxu0 0.0
    %130 = vmatprep.subr.mxu0 0.0
    %131 = vmatpush1.msra.mxu0 0.0
    %132 = vmatprep.subr.mxu0 0.0
    %133 = vmatpush1.msra.mxu0 0.0
    %134 = vmatprep.subr.mxu0 0.0
    %135 = vmatpush1.msra.mxu0 0.0
    %136 = vmatprep.subr.mxu0 0.0
    %137 = vmatpush1.msra.mxu0 0.0
    %138 = vmatprep.subr.mxu0 0.0
    %139 = vmatpush1.msra.mxu0 0.0
    %140 = vmatprep.mubr.f32.mxu0 0.0
    %141 = vmatmul.mubr.f32.gmra.mrb[0].mxu0 %v71
    %v142 = vpop.f32.mrb[0].mxu0
    %v143 = vadd.f32 0.0, %v142
    %v144 = vpop.f32.mrb[0].mxu0
    %145 = vmatprep.mubr.f32.mxu0 0.0
    %146 = vmatmul.mubr.f32.gmra.mrb[0].mxu0 %v74
    %v147 = vpop.f32.mrb[0].mxu0
    %v148 = vadd.f32 0.0, %v147
    %v149 = vpop.f32.mrb[0].mxu0
    %150 = vdwg.mxu0
    %v151 = vadd.f32 %v61, %v143
    %v152 = vadd.f32 %v62, %v148
    %vm153 = vcmask 785408
    %154 = vst.msk [vmem:[#allocation2] sm:$0xff] %vm153, %v151
    %155 = vst.msk [vmem:[#allocation2 + $0x8] sm:$0xff] %vm153, %v152
    // Predicated region
    $region30: #{tpu_custom_call.1} parent=1 // pred_check
      %p156 = pneg %p54
    $region31: #{tpu_custom_call.1} parent=1 // pred_check_branch
      %158 = sbr.rel (%p156) target = $region33
    $region32: #{tpu_custom_call.1} parent=1 // pred_region
      %v159 = vld [vmem:[#allocation2] sm:$0xff]
      %v160 = vld [vmem:[#allocation2 + $0x8] sm:$0xff]
      %v161 = vld [vmem:[#allocation8] sm:$0x1]
      %v163 = vlaneseq
      %v164 = vshrl.u32 %v163, 7
      %v165 = vsub.s32 0, %v164
      %v166 = vrot.slane %v161, %v165
      %v168 = vadd.f32 %v159, %v166
      %v169 = vadd.f32 %v160, %v166
      %170 = vst.msk [vmem:[#allocation9] sm:$0xff] %vm153, %v168
      %171 = vst.msk [vmem:[#allocation9 + $0x8] sm:$0xff] %vm153, %v169
    $region33: #{tpu_custom_call.1} parent=1 // pred_fallthru
      _
    // Predicated region
    $region34: #{tpu_custom_call.1} parent=1 // pred_check
      _
    $region35: #{tpu_custom_call.1} parent=1 // pred_check_branch
      %173 = sbr.rel (0) target = $region37
    $region36: #{tpu_custom_call.1} parent=1 // pred_region
      %s175 = ssub.s32 256, 256
      %176 = vsyncadd [#allocation5], %s175
      %s177 = sshll.u32 [#allocation9], 4
      %s178 = int_to_ptr.vmem [resolvable:$true] %s177
      %183 = dma.vmem_to_hbm [thread:$0]  %s178, 256, %s3, [#allocation5], 128, 128, 8
    $region37: #{tpu_custom_call.1} parent=1 // pred_fallthru
      _
    // Predicated region
    $region38: #{tpu_custom_call.1} parent=1 // pred_check
      _
    $region39: #{tpu_custom_call.1} parent=1 // pred_check_branch
      %185 = sbr.rel (0) target = $region41
    $region40: #{tpu_custom_call.1} parent=1 // pred_region
      %186 = dma.done [#allocation5], 256
    $region41: #{tpu_custom_call.1} parent=1 // pred_fallthru
      _
    %187 = vsyncpa [#allocation4], 1
    %188 = vsyncpa [#allocation7], 1
    %189 = vsyncpa [#allocation5], 1

</llo_original>
